<compile_context>
chip_gen: v7x
topology: tpu7x:2x2x1
jax: 0.10.0
libtpu: 0.0.40
codegen_flags: <defaults>
</compile_context>

<pallas_src>
import math

import numpy as np
import jax
import jax.numpy as jnp
from jax.experimental import pallas as pl
from jax.experimental.pallas import tpu as pltpu


SUBLANE = 8


def _round_up(x, m):
    return ((x + m - 1) // m) * m


# ----------------------------------------------------------------------------
# Fused tower kernel.
#   refs = (x_ref, W0, h0, W1, h1, ..., o_ref)
#   x_ref : [tm, C_in]      row tile of the flattened [batch*seq, ch] input
#   Wi    : [cin_i, cout_i] pre-transposed conv weight with the BN scale folded
#                           into its columns, bf16, VMEM resident
#   hi    : [1,   cout_i]   folded BatchNorm shift (f32), VMEM resident
#   o_ref : [tm, out_channels]
# Per block: GELU (EUP tanh + VPU) -> bf16 x bf16 matmul on the MXU with f32
# accumulation -> bias add (VPU).
# ----------------------------------------------------------------------------
def _tower_kernel(*refs):
    x_ref, o_ref = refs[0], refs[-1]
    param_refs = refs[1:-1]
    n_blocks = len(param_refs) // 2

    cur = x_ref[...].astype(jnp.float32)
    for b in range(n_blocks):  # unrolled at trace time (repeat is static)
        w = param_refs[2 * b][...]           # bf16 [cin, cout], BN scale folded
        shift = param_refs[2 * b + 1][...]   # f32  [1,   cout]
        # scbasset GELU: sigmoid(1.702 x) * x; sigmoid(z) = 0.5 + 0.5*tanh(z/2)
        cur = cur * (0.5 + 0.5 * jnp.tanh(0.851 * cur))
        cur = jnp.dot(cur.astype(jnp.bfloat16), w,
                      preferred_element_type=jnp.float32)   # MXU, f32 acc
        cur = cur + shift                                    # folded BN (eval)
    o_ref[...] = cur.astype(o_ref.dtype)


# ----------------------------------------------------------------------------
# One-time parameter preparation (call once, reuse for every forward):
#   - fold eval-mode BatchNorm into the conv weight columns (scale) and a bias
#     term (shift)
#   - pre-transpose PyTorch Conv1d weight [out, in] -> [in, out]
#   - cast the weight to bf16 (matmul operand dtype); shift stays f32
# No channel padding: the weights are tiny, fully VMEM-resident, and the MXU /
# Mosaic handle non-128 contraction / output widths internally.
# ----------------------------------------------------------------------------
def prepare_tower_params(conv_weights, bn_gammas, bn_betas, bn_means, bn_vars,
                         eps=1e-5, weight_dtype=jnp.bfloat16):
    prepared = []
    for W, g, b, m, v in zip(conv_weights, bn_gammas, bn_betas, bn_means, bn_vars):
        scale = (g / jnp.sqrt(v + eps)).astype(jnp.float32)
        shift = (b.astype(jnp.float32) - m.astype(jnp.float32) * scale)
        Wf = (W.astype(jnp.float32).T * scale[None, :]).astype(weight_dtype)
        prepared.append((Wf, shift.reshape(1, -1)))
    return prepared


def _vmem_estimate(tm, c_in, chans, weight_bytes):
    """Rough VMEM budget: double-buffered input + output tiles, per-block f32
    activation temporaries from the unrolled chain, resident params x2."""
    max_ch = max([c_in] + list(chans))
    io = 2 * tm * c_in * 4 + 2 * tm * chans[-1] * 4
    act = 3 * tm * max_ch * 4
    return io + act + 2 * weight_bytes


def conv_tower_forward(x, prepared_params, out_channels, *,
                       tm_max=1024, vmem_budget_bytes=40 * 1024 * 1024):
    """x: [batch, seq_len, ch_in] (channels-last), prepared_params from
    prepare_tower_params().  Returns [batch, seq_len, out_channels]."""
    B, L, C = x.shape
    M = B * L
    chans = [w.shape[1] for (w, _) in prepared_params]
    assert prepared_params[0][0].shape[0] == C, (prepared_params[0][0].shape, C)
    assert chans[-1] == out_channels, (chans[-1], out_channels)

    weight_bytes = sum(w.size * w.dtype.itemsize + s.size * s.dtype.itemsize
                       for (w, s) in prepared_params)

    # Row tile: multiple of 8 sublanes, shrunk if the f32 activation chain plus
    # double-buffered I/O tiles would blow the (v7x-safe) VMEM budget.
    tm = min(tm_max, _round_up(M, SUBLANE))
    while tm > 64 and _vmem_estimate(tm, C, chans, weight_bytes) > vmem_budget_bytes:
        tm = max(64, _round_up(tm // 2, SUBLANE))

    x2d = x.reshape(M, C)              # free reshape, no channel padding in HBM
    M_pad = _round_up(M, tm)
    if M_pad != M:
        # Small row-only pad so the grid divides evenly; channels never padded.
        x2d = jnp.pad(x2d, ((0, M_pad - M), (0, 0)))

    in_specs = [pl.BlockSpec((tm, C), lambda i: (i, 0))]
    flat_params = []
    flops = 0
    transcendentals = 0
    cin = C
    for (w, s) in prepared_params:
        cout = w.shape[1]
        in_specs.append(pl.BlockSpec(w.shape, lambda i: (0, 0)))  # VMEM resident
        in_specs.append(pl.BlockSpec(s.shape, lambda i: (0, 0)))  # VMEM resident
        flat_params += [w, s]
        flops += 2 * M_pad * cin * cout
        transcendentals += M_pad * cin
        cin = cout

    out = pl.pallas_call(
        _tower_kernel,
        out_shape=jax.ShapeDtypeStruct((M_pad, out_channels), x.dtype),
        grid=(M_pad // tm,),
        in_specs=in_specs,
        out_specs=pl.BlockSpec((tm, out_channels), lambda i: (i, 0)),
        compiler_params=pltpu.CompilerParams(
            # Row tiles are independent; "parallel" lets the runtime shard the
            # grid across the 2 v7x TensorCores.
            dimension_semantics=("parallel",),
            vmem_limit_bytes=48 * 1024 * 1024,
        ),
        cost_estimate=pl.CostEstimate(
            flops=flops,
            transcendentals=transcendentals,
            bytes_accessed=x2d.dtype.itemsize * M_pad * C
                           + x.dtype.itemsize * M_pad * out_channels
                           + weight_bytes,
        ),
    )(x2d, *flat_params)

    if M_pad != M:
        out = out[:M]
    return out.reshape(B, L, out_channels)


# ----------------------------------------------------------------------------
# ConvTower channel-dim schedule and parameter init mirroring the PyTorch module
# ----------------------------------------------------------------------------
def conv_tower_block_dims(n_filters_init, n_filters_end=None, n_filters_mult=None,
                          divisible_by=1, repeat=1):
    """(ch_in, ch_out) per ConvBlock, mirroring ConvTower.__init__."""
    def _round(v):
        return int(np.round(v / divisible_by) * divisible_by)
    if n_filters_mult is None:
        assert n_filters_end is not None
        if repeat == 1:
            n_filters_mult = 1.0
        else:
            n_filters_mult = np.exp(
                np.log(n_filters_end / n_filters_init) / (repeat - 1))
    dims = []
    rep_in = rep_out = n_filters_init
    for _ in range(repeat):
        dims.append((_round(rep_in), _round(rep_out)))
        rep_in = rep_out
        rep_out *= n_filters_mult
    return dims


def init_conv_tower_params(key, block_dims, dtype=jnp.float32):
    """Conv1d weights: kaiming_normal_(mode='fan_out'), k=1, bias=False.
    BatchNorm1d: gamma~1, beta~0, running stats lightly perturbed so the
    eval-mode BN affine is numerically non-trivial in the check."""
    conv_w, gam, bet, mean, var = [], [], [], [], []
    for (cin, cout) in block_dims:
        key, kw, kg, kb, km, kv = jax.random.split(key, 6)
        std = math.sqrt(2.0) / math.sqrt(cout)          # fan_out = cout * k, k = 1
        conv_w.append(std * jax.random.normal(kw, (cout, cin), dtype=dtype))
        gam.append(1.0 + 0.1 * jax.random.normal(kg, (cout,), dtype=dtype))
        bet.append(0.1 * jax.random.normal(kb, (cout,), dtype=dtype))
        mean.append(0.1 * jax.random.normal(km, (cout,), dtype=dtype))
        var.append(1.0 + 0.1 * jax.random.uniform(kv, (cout,), dtype=dtype))
    return conv_w, gam, bet, mean, var


def reference_tower(x, conv_w, gam, bet, mean, var, eps=1e-5):
    """Plain-JAX f32 reference of the default ConvTower forward (channels-last)."""
    cur = x
    for W, g, b, m, v in zip(conv_w, gam, bet, mean, var):
        cur = jax.nn.sigmoid(1.702 * cur) * cur
        cur = jnp.einsum("blc,oc->blo", cur, W,
                         precision=jax.lax.Precision.HIGHEST)
        scale = g / jnp.sqrt(v + eps)
        cur = cur * scale + (b - m * scale)
    return cur


if __name__ == "__main__":
    # Small shapes consistent with the module: [batch, seq_len, ch]
    batch, seq_len = 2, 16
    n_filters_init, n_filters_end, repeat = 32, 64, 3

    block_dims = conv_tower_block_dims(
        n_filters_init, n_filters_end=n_filters_end, repeat=repeat)
    ch_in0 = block_dims[0][0]
    ch_out_last = block_dims[-1][1]

    key = jax.random.PRNGKey(0)
    k_x, k_p = jax.random.split(key)
    x = jax.random.normal(k_x, (batch, seq_len, ch_in0), dtype=jnp.float32)
    conv_w, gam, bet, mean, var = init_conv_tower_params(k_p, block_dims)

    # Param prep (transpose / BN fold / bf16 cast) happens ONCE here, not per call.
    prepared = prepare_tower_params(conv_w, gam, bet, mean, var)

    out = conv_tower_forward(x, prepared, ch_out_last)
    out = jax.block_until_ready(out)

    ref = reference_tower(x, conv_w, gam, bet, mean, var)
    assert out.shape == (batch, seq_len, ch_out_last), out.shape
    # bf16 matmul operands (f32 accumulation) vs. f32 HIGHEST reference.
    assert jnp.allclose(out, ref, atol=5e-2, rtol=5e-2), \
        float(jnp.max(jnp.abs(out - ref)))

    print("KERNEL_OK")
</pallas_src>

<mosaic_0001>
module attributes {stable_mosaic.version = 11 : i64} {
  func.func @_tower_kernel(%arg0: i32, %arg1: memref<32x32xf32, #tpu.memory_space<vmem>>, %arg2: memref<32x32xbf16, #tpu.memory_space<vmem>>, %arg3: memref<1x32xf32, #tpu.memory_space<vmem>>, %arg4: memref<32x45xbf16, #tpu.memory_space<vmem>>, %arg5: memref<1x45xf32, #tpu.memory_space<vmem>>, %arg6: memref<45x64xbf16, #tpu.memory_space<vmem>>, %arg7: memref<1x64xf32, #tpu.memory_space<vmem>>, %arg8: memref<32x64xf32, #tpu.memory_space<vmem>>) attributes {dimension_semantics = [#tpu.dimension_semantics<parallel>], iteration_bounds = array<i64: 1>, scalar_prefetch = 0 : i64, scratch_operands = 0 : i64, tpu.core_type = #tpu.core_type<tc>, window_params = [{transform_indices = @transform_0, window_bounds = array<i64: 32, 32>}, {pipeline_mode = #tpu.pipeline_mode<synchronous>, transform_indices = @transform_1, window_bounds = array<i64: 32, 32>}, {pipeline_mode = #tpu.pipeline_mode<synchronous>, transform_indices = @transform_2, window_bounds = array<i64: 1, 32>}, {pipeline_mode = #tpu.pipeline_mode<synchronous>, transform_indices = @transform_3, window_bounds = array<i64: 32, 45>}, {pipeline_mode = #tpu.pipeline_mode<synchronous>, transform_indices = @transform_4, window_bounds = array<i64: 1, 45>}, {pipeline_mode = #tpu.pipeline_mode<synchronous>, transform_indices = @transform_5, window_bounds = array<i64: 45, 64>}, {pipeline_mode = #tpu.pipeline_mode<synchronous>, transform_indices = @transform_6, window_bounds = array<i64: 1, 64>}, {transform_indices = @transform_7, window_bounds = array<i64: 32, 64>}]} {
    %c0 = arith.constant 0 : index
    %c0_0 = arith.constant 0 : index
    %0 = vector.load %arg1[%c0, %c0_0] : memref<32x32xf32, #tpu.memory_space<vmem>>, vector<32x32xf32>
    %c0_1 = arith.constant 0 : index
    %c0_2 = arith.constant 0 : index
    %1 = vector.load %arg2[%c0_1, %c0_2] : memref<32x32xbf16, #tpu.memory_space<vmem>>, vector<32x32xbf16>
    %c0_3 = arith.constant 0 : index
    %c0_4 = arith.constant 0 : index
    %2 = vector.load %arg3[%c0_3, %c0_4] : memref<1x32xf32, #tpu.memory_space<vmem>>, vector<1x32xf32>
    %cst = arith.constant 8.510000e-01 : f32
    %3 = vector.broadcast %cst : f32 to vector<32x32xf32>
    %4 = arith.mulf %3, %0 : vector<32x32xf32>
    %5 = math.tanh %4 : vector<32x32xf32>
    %cst_5 = arith.constant 5.000000e-01 : f32
    %6 = vector.broadcast %cst_5 : f32 to vector<32x32xf32>
    %7 = arith.mulf %6, %5 : vector<32x32xf32>
    %cst_6 = arith.constant 5.000000e-01 : f32
    %8 = vector.broadcast %cst_6 : f32 to vector<32x32xf32>
    %9 = arith.addf %8, %7 : vector<32x32xf32>
    %10 = arith.mulf %0, %9 : vector<32x32xf32>
    %11 = arith.truncf %10 : vector<32x32xf32> to vector<32x32xbf16>
    %cst_7 = arith.constant dense<0.000000e+00> : vector<32x32xf32>
    %12 = tpu.matmul %11, %1, %cst_7 {dimension_numbers = #tpu.dot_dimension_numbers<[1], [0], [0], [1], [0, 0, 1, 1], [], []>} : vector<32x32xbf16>, vector<32x32xbf16>, vector<32x32xf32> -> vector<32x32xf32>
    %13 = vector.broadcast %2 : vector<1x32xf32> to vector<32x32xf32>
    %14 = arith.addf %12, %13 : vector<32x32xf32>
    %c0_8 = arith.constant 0 : index
    %c0_9 = arith.constant 0 : index
    %15 = vector.load %arg4[%c0_8, %c0_9] : memref<32x45xbf16, #tpu.memory_space<vmem>>, vector<32x45xbf16>
    %c0_10 = arith.constant 0 : index
    %c0_11 = arith.constant 0 : index
    %16 = vector.load %arg5[%c0_10, %c0_11] : memref<1x45xf32, #tpu.memory_space<vmem>>, vector<1x45xf32>
    %cst_12 = arith.constant 8.510000e-01 : f32
    %17 = vector.broadcast %cst_12 : f32 to vector<32x32xf32>
    %18 = arith.mulf %17, %14 : vector<32x32xf32>
    %19 = math.tanh %18 : vector<32x32xf32>
    %cst_13 = arith.constant 5.000000e-01 : f32
    %20 = vector.broadcast %cst_13 : f32 to vector<32x32xf32>
    %21 = arith.mulf %20, %19 : vector<32x32xf32>
    %cst_14 = arith.constant 5.000000e-01 : f32
    %22 = vector.broadcast %cst_14 : f32 to vector<32x32xf32>
    %23 = arith.addf %22, %21 : vector<32x32xf32>
    %24 = arith.mulf %14, %23 : vector<32x32xf32>
    %25 = arith.truncf %24 : vector<32x32xf32> to vector<32x32xbf16>
    %cst_15 = arith.constant dense<0.000000e+00> : vector<32x45xf32>
    %26 = tpu.matmul %25, %15, %cst_15 {dimension_numbers = #tpu.dot_dimension_numbers<[1], [0], [0], [1], [0, 0, 1, 1], [], []>} : vector<32x32xbf16>, vector<32x45xbf16>, vector<32x45xf32> -> vector<32x45xf32>
    %27 = vector.broadcast %16 : vector<1x45xf32> to vector<32x45xf32>
    %28 = arith.addf %26, %27 : vector<32x45xf32>
    %c0_16 = arith.constant 0 : index
    %c0_17 = arith.constant 0 : index
    %29 = vector.load %arg6[%c0_16, %c0_17] : memref<45x64xbf16, #tpu.memory_space<vmem>>, vector<45x64xbf16>
    %c0_18 = arith.constant 0 : index
    %c0_19 = arith.constant 0 : index
    %30 = vector.load %arg7[%c0_18, %c0_19] : memref<1x64xf32, #tpu.memory_space<vmem>>, vector<1x64xf32>
    %cst_20 = arith.constant 8.510000e-01 : f32
    %31 = vector.broadcast %cst_20 : f32 to vector<32x45xf32>
    %32 = arith.mulf %31, %28 : vector<32x45xf32>
    %33 = math.tanh %32 : vector<32x45xf32>
    %cst_21 = arith.constant 5.000000e-01 : f32
    %34 = vector.broadcast %cst_21 : f32 to vector<32x45xf32>
    %35 = arith.mulf %34, %33 : vector<32x45xf32>
    %cst_22 = arith.constant 5.000000e-01 : f32
    %36 = vector.broadcast %cst_22 : f32 to vector<32x45xf32>
    %37 = arith.addf %36, %35 : vector<32x45xf32>
    %38 = arith.mulf %28, %37 : vector<32x45xf32>
    %39 = arith.truncf %38 : vector<32x45xf32> to vector<32x45xbf16>
    %cst_23 = arith.constant dense<0.000000e+00> : vector<32x64xf32>
    %40 = tpu.matmul %39, %29, %cst_23 {dimension_numbers = #tpu.dot_dimension_numbers<[1], [0], [0], [1], [0, 0, 1, 1], [], []>} : vector<32x45xbf16>, vector<45x64xbf16>, vector<32x64xf32> -> vector<32x64xf32>
    %41 = vector.broadcast %30 : vector<1x64xf32> to vector<32x64xf32>
    %42 = arith.addf %40, %41 : vector<32x64xf32>
    %c0_24 = arith.constant 0 : index
    %c0_25 = arith.constant 0 : index
    %43 = vector.load %arg8[%c0_24, %c0_25] : memref<32x64xf32, #tpu.memory_space<vmem>>, vector<32x64xf32>
    tpu.vector_store %arg8[%c0_24, %c0_25], %42 {strides = array<i32>} : memref<32x64xf32, #tpu.memory_space<vmem>>, vector<32x64xf32>,
    return
  }
  func.func @transform_0(%arg0: i32) -> (i32, i32) {
    %c0_i32 = arith.constant 0 : i32
    %c0_i32_0 = arith.constant 0 : i32
    return %arg0, %c0_i32 : i32, i32
  }
  func.func @transform_1(%arg0: i32) -> (i32, i32) {
    %c0_i32 = arith.constant 0 : i32
    %c0_i32_0 = arith.constant 0 : i32
    %c0_i32_1 = arith.constant 0 : i32
    return %c0_i32, %c0_i32_0 : i32, i32
  }
  func.func @transform_2(%arg0: i32) -> (i32, i32) {
    %c0_i32 = arith.constant 0 : i32
    %c0_i32_0 = arith.constant 0 : i32
    %c0_i32_1 = arith.constant 0 : i32
    return %c0_i32, %c0_i32_0 : i32, i32
  }
  func.func @transform_3(%arg0: i32) -> (i32, i32) {
    %c0_i32 = arith.constant 0 : i32
    %c0_i32_0 = arith.constant 0 : i32
    %c0_i32_1 = arith.constant 0 : i32
    return %c0_i32, %c0_i32_0 : i32, i32
  }
  func.func @transform_4(%arg0: i32) -> (i32, i32) {
    %c0_i32 = arith.constant 0 : i32
    %c0_i32_0 = arith.constant 0 : i32
    %c0_i32_1 = arith.constant 0 : i32
    return %c0_i32, %c0_i32_0 : i32, i32
  }
  func.func @transform_5(%arg0: i32) -> (i32, i32) {
    %c0_i32 = arith.constant 0 : i32
    %c0_i32_0 = arith.constant 0 : i32
    %c0_i32_1 = arith.constant 0 : i32
    return %c0_i32, %c0_i32_0 : i32, i32
  }
  func.func @transform_6(%arg0: i32) -> (i32, i32) {
    %c0_i32 = arith.constant 0 : i32
    %c0_i32_0 = arith.constant 0 : i32
    %c0_i32_1 = arith.constant 0 : i32
    return %c0_i32, %c0_i32_0 : i32, i32
  }
  func.func @transform_7(%arg0: i32) -> (i32, i32) {
    %c0_i32 = arith.constant 0 : i32
    %c0_i32_0 = arith.constant 0 : i32
    return %arg0, %c0_i32 : i32, i32
  }
}

</mosaic_0001>

<llo_original>
// kernel: tpu_custom_call.1
$region0: #{tpu_custom_call.1}
  #allocation0 [shape = 'u32[]', space=smem, size = 0x4, offset = 0x4, fixed_abs, tag = 'smem constant byte address 0x4 - core index']
  #allocation1 [shape = 'u32[144,128]{1,0:T(1,128)}', space=vmem, size = 0x12000, scoped, tag = 'internal scratch']
  %s0 = inlined_call_operand.hbm [shape: f32[32,32], index: 0, kind: input, shape index: {}]
  %s1 = inlined_call_operand.hbm [shape: bf16[32,32], index: 1, kind: input, shape index: {}]
  %s2 = inlined_call_operand.vmem [shape: f32[1,32], index: 2, kind: input, shape index: {}]
  %s3 = inlined_call_operand.hbm [shape: bf16[32,45], index: 3, kind: input, shape index: {}]
  %s4 = inlined_call_operand.vmem [shape: f32[1,45], index: 4, kind: input, shape index: {}]
  %s5 = inlined_call_operand.hbm [shape: bf16[45,64], index: 5, kind: input, shape index: {}]
  %s6 = inlined_call_operand.vmem [shape: f32[1,64], index: 6, kind: input, shape index: {}]
  %s7 = inlined_call_operand.hbm [shape: f32[32,64], index: 7, kind: output, shape index: {}]
  %s8 = sld [smem:[#allocation0]]
  $region54: #{tpu_custom_call.1} parent=0
    _
  %s10 = ssub.s32 1, %s8
  %s11 = scalar_select 0, %s10, %s8
  $region1: #{tpu_custom_call.1} parent=0
    #allocation2 [shape = 'u8[16384]{0}', space=vmem, size = 0x4000, scoped, tag = 'input window, operand 0, single buffered']
    #allocation3 [shape = 's32[1]{0}', space=sflag, size = 0x4, scoped, tag = 'scoped memory for tpu_custom_call.1']
    #allocation4 [shape = 's32[1]{0}', space=sflag, size = 0x4, scoped, tag = 'scoped memory for tpu_custom_call.1']
    #allocation5 [shape = 'u8[8192]{0}', space=vmem, size = 0x2000, scoped, tag = 'input window, operand 1, single buffered']
    #allocation6 [shape = 's32[1]{0}', space=sflag, size = 0x4, scoped, tag = 'scoped memory for tpu_custom_call.1']
    #allocation7 [shape = 'u8[8192]{0}', space=vmem, size = 0x2000, scoped, tag = 'input window, operand 3, single buffered']
    #allocation8 [shape = 'u8[12288]{0}', space=vmem, size = 0x3000, scoped, tag = 'input window, operand 5, single buffered']
    #allocation9 [shape = 's32[1]{0}', space=sflag, size = 0x4, scoped, tag = 'scoped memory for tpu_custom_call.1']
    #allocation10 [shape = 'u8[16384]{0}', space=vmem, size = 0x4000, scoped, tag = 'output window, operand 0, single buffered']
    %12 = vsyncpa [#allocation3], 0
    %13 = vsyncpa [#allocation6], 0
    %14 = vsyncpa [#allocation9], 0
    %15 = vsyncpa [#allocation4], 0
    // Predicated region
    $region2: #{tpu_custom_call.1} parent=1 // pred_check
      _
    $region3: #{tpu_custom_call.1} parent=1 // pred_check_branch
      %17 = sbr.rel (0) target = $region5
    $region4: #{tpu_custom_call.1} parent=1 // pred_region
      %s19 = ssub.s32 512, 512
      %20 = vsyncadd [#allocation3], %s19
      %s21 = sshll.u32 [#allocation2], 4
      %s22 = int_to_ptr.vmem [resolvable:$true] %s21
      %27 = dma.hbm_to_vmem [thread:$0]  %s0, 512, %s22, [#allocation3], 128, 128, 8
    $region5: #{tpu_custom_call.1} parent=1 // pred_fallthru
      _
    // Predicated region
    $region6: #{tpu_custom_call.1} parent=1 // pred_check
      _
    $region7: #{tpu_custom_call.1} parent=1 // pred_check_branch
      %29 = sbr.rel (0) target = $region9
    $region8: #{tpu_custom_call.1} parent=1 // pred_region
      %s31 = ssub.s32 256, 256
      %32 = vsyncadd [#allocation6], %s31
      %s33 = sshll.u32 [#allocation5], 4
      %s34 = int_to_ptr.vmem [resolvable:$true] %s33
      %39 = dma.hbm_to_vmem [thread:$0]  %s1, 256, %s34, [#allocation6], 64, 64, 4
    $region9: #{tpu_custom_call.1} parent=1 // pred_fallthru
      _
    // Predicated region
    $region10: #{tpu_custom_call.1} parent=1 // pred_check
      _
    $region11: #{tpu_custom_call.1} parent=1 // pred_check_branch
      %41 = sbr.rel (0) target = $region13
    $region12: #{tpu_custom_call.1} parent=1 // pred_region
      _
    $region13: #{tpu_custom_call.1} parent=1 // pred_fallthru
      _
    // Predicated region
    $region14: #{tpu_custom_call.1} parent=1 // pred_check
      _
    $region15: #{tpu_custom_call.1} parent=1 // pred_check_branch
      %43 = sbr.rel (0) target = $region17
    $region16: #{tpu_custom_call.1} parent=1 // pred_region
      %s45 = ssub.s32 256, 256
      %46 = vsyncadd [#allocation6], %s45
      %s47 = sshll.u32 [#allocation7], 4
      %s48 = int_to_ptr.vmem [resolvable:$true] %s47
      %53 = dma.hbm_to_vmem [thread:$0]  %s3, 256, %s48, [#allocation6], 64, 64, 4
    $region17: #{tpu_custom_call.1} parent=1 // pred_fallthru
      _
    // Predicated region
    $region18: #{tpu_custom_call.1} parent=1 // pred_check
      _
    $region19: #{tpu_custom_call.1} parent=1 // pred_check_branch
      %55 = sbr.rel (0) target = $region21
    $region20: #{tpu_custom_call.1} parent=1 // pred_region
      _
    $region21: #{tpu_custom_call.1} parent=1 // pred_fallthru
      _
    // Predicated region
    $region22: #{tpu_custom_call.1} parent=1 // pred_check
      _
    $region23: #{tpu_custom_call.1} parent=1 // pred_check_branch
      %57 = sbr.rel (0) target = $region25
    $region24: #{tpu_custom_call.1} parent=1 // pred_region
      %s59 = ssub.s32 384, 384
      %60 = vsyncadd [#allocation9], %s59
      %s61 = sshll.u32 [#allocation8], 4
      %s62 = int_to_ptr.vmem [resolvable:$true] %s61
      %67 = dma.hbm_to_vmem [thread:$0]  %s5, 384, %s62, [#allocation9], 64, 64, 4
    $region25: #{tpu_custom_call.1} parent=1 // pred_fallthru
      _
    // Predicated region
    $region26: #{tpu_custom_call.1} parent=1 // pred_check
      _
    $region27: #{tpu_custom_call.1} parent=1 // pred_check_branch
      %69 = sbr.rel (0) target = $region29
    $region28: #{tpu_custom_call.1} parent=1 // pred_region
      _
    $region29: #{tpu_custom_call.1} parent=1 // pred_fallthru
      _
    // Predicated region
    $region30: #{tpu_custom_call.1} parent=1 // pred_check
      _
    $region31: #{tpu_custom_call.1} parent=1 // pred_check_branch
      %71 = sbr.rel (0) target = $region33
    $region32: #{tpu_custom_call.1} parent=1 // pred_region
      %72 = dma.done [#allocation3], 512
    $region33: #{tpu_custom_call.1} parent=1 // pred_fallthru
      _
    // Predicated region
    $region34: #{tpu_custom_call.1} parent=1 // pred_check
      _
    $region35: #{tpu_custom_call.1} parent=1 // pred_check_branch
      %74 = sbr.rel (0) target = $region37
    $region36: #{tpu_custom_call.1} parent=1 // pred_region
      %75 = dma.done [#allocation6], 256
    $region37: #{tpu_custom_call.1} parent=1 // pred_fallthru
      _
    // Predicated region
    $region38: #{tpu_custom_call.1} parent=1 // pred_check
      _
    $region39: #{tpu_custom_call.1} parent=1 // pred_check_branch
      %77 = sbr.rel (0) target = $region41
    $region40: #{tpu_custom_call.1} parent=1 // pred_region
      %78 = dma.done [#allocation6], 256
    $region41: #{tpu_custom_call.1} parent=1 // pred_fallthru
      _
    // Predicated region
    $region42: #{tpu_custom_call.1} parent=1 // pred_check
      _
    $region43: #{tpu_custom_call.1} parent=1 // pred_check_branch
      %80 = sbr.rel (0) target = $region45
    $region44: #{tpu_custom_call.1} parent=1 // pred_region
      %81 = dma.done [#allocation9], 384
    $region45: #{tpu_custom_call.1} parent=1 // pred_fallthru
      _
    %v83 = vld [vmem:[#allocation2] sm:$0xff]
    %v84 = vld [vmem:[#allocation2 + $0x8] sm:$0xff]
    %v85 = vld [vmem:[#allocation2 + $0x10] sm:$0xff]
    %v86 = vld [vmem:[#allocation2 + $0x18] sm:$0xff]
    %v87 = vld [vmem:[#allocation5] sm:$0xf]
    %v88 = vld [vmem:[#allocation5 + $0x4] sm:$0xf]
    %v89 = vld [vmem:[#allocation5 + $0x8] sm:$0xf]
    %v90 = vld [vmem:[#allocation5 + $0xc] sm:$0xf]
    %v91 = vld [vmem:[%s2] sm:$0x1]
    %v92 = vmul.f32 %v83, 0.851
    %v93 = vmul.f32 %v84, 0.851
    %v94 = vmul.f32 %v85, 0.851
    %v95 = vmul.f32 %v86, 0.851
    %v96 = vtanh.pop %v92
    %v97 = vtanh.pop %v93
    %v98 = vtanh.pop %v94
    %v99 = vtanh.pop %v95
    %v100 = vmul.f32 %v96, 0.5
    %v101 = vmul.f32 %v97, 0.5
    %v102 = vmul.f32 %v98, 0.5
    %v103 = vmul.f32 %v99, 0.5
    %v104 = vadd.f32 %v100, 0.5
    %v105 = vadd.f32 %v101, 0.5
    %v106 = vadd.f32 %v102, 0.5
    %v107 = vadd.f32 %v103, 0.5
    %v108 = vmul.f32 %v83, %v104
    %v109 = vmul.f32 %v84, %v105
    %v110 = vmul.f32 %v85, %v106
    %v111 = vmul.f32 %v86, %v107
    %v112 = vpack.c.bf16 %v109, %v108
    %v113 = vpack.c.bf16 %v111, %v110
    %v115 = vlaneseq
    %v116 = vshrl.u32 %v115, 7
    %v117 = vsub.s32 0, %v116
    %v118 = vrot.slane %v91, %v117
    %v124 = vunpack.c.l.b16 %v87
    %v125 = vunpack.c.l.b16 %v88
    %v126 = vunpack.c.l.b16 %v89
    %v127 = vunpack.c.l.b16 %v90
    %v128 = vpack.c.b16 %v125, %v124
    %v129 = vpack.c.b16 %v127, %v126
    %vm132 = vcmask 261120
    %v134 = vsel %vm132, %v112, 0
    %v137 = vsel %vm132, %v113, 0
    %139 = vmatprep.subr.bf16.mxu0 0
    %140 = vmatpush1.bf16.msra.mxu0 %v128
    %141 = vmatprep.subr.bf16.mxu0 0
    %142 = vmatpush1.bf16.msra.mxu0 %v129
    %143 = vmatprep.subr.bf16.mxu0 0
    %144 = vmatpush1.bf16.msra.mxu0 0
    %145 = vmatprep.subr.bf16.mxu0 0
    %146 = vmatpush1.bf16.msra.mxu0 0
    %147 = vmatprep.subr.bf16.mxu0 0
    %148 = vmatpush1.bf16.msra.mxu0 0
    %149 = vmatprep.subr.bf16.mxu0 0
    %150 = vmatpush1.bf16.msra.mxu0 0
    %151 = vmatprep.subr.bf16.mxu0 0
    %152 = vmatpush1.bf16.msra.mxu0 0
    %153 = vmatprep.subr.bf16.mxu0 0
    %154 = vmatpush1.bf16.msra.mxu0 0
    %155 = vmatprep.subr.bf16.mxu0 0
    %156 = vmatpush1.bf16.msra.mxu0 0
    %157 = vmatprep.subr.bf16.mxu0 0
    %158 = vmatpush1.bf16.msra.mxu0 0
    %159 = vmatprep.subr.bf16.mxu0 0
    %160 = vmatpush1.bf16.msra.mxu0 0
    %161 = vmatprep.subr.bf16.mxu0 0
    %162 = vmatpush1.bf16.msra.mxu0 0
    %163 = vmatprep.subr.bf16.mxu0 0
    %164 = vmatpush1.bf16.msra.mxu0 0
    %165 = vmatprep.subr.bf16.mxu0 0
    %166 = vmatpush1.bf16.msra.mxu0 0
    %167 = vmatprep.subr.bf16.mxu0 0
    %168 = vmatpush1.bf16.msra.mxu0 0
    %169 = vmatprep.subr.bf16.mxu0 0
    %170 = vmatpush1.bf16.msra.mxu0 0
    %171 = vmatprep.mubr.bf16.mxu0 0
    %172 = vmatmul.mubr.bf16.gmra.mrb[0].mxu0 %v134
    %v173 = vpop.f32.mrb[0].mxu0
    %v174 = vadd.f32 %v118, %v173
    %v175 = vpop.f32.mrb[0].mxu0
    %v176 = vpop.f32.mrb[0].mxu0
    %v177 = vadd.f32 %v118, %v176
    %v178 = vpop.f32.mrb[0].mxu0
    %179 = vmatprep.mubr.bf16.mxu0 0
    %180 = vmatmul.mubr.bf16.gmra.mrb[0].mxu0 %v137
    %v181 = vpop.f32.mrb[0].mxu0
    %v182 = vadd.f32 %v118, %v181
    %v183 = vpop.f32.mrb[0].mxu0
    %v184 = vpop.f32.mrb[0].mxu0
    %v185 = vadd.f32 %v118, %v184
    %v186 = vpop.f32.mrb[0].mxu0
    %187 = vdwg.mxu0
    %v188 = vld [vmem:[#allocation7] sm:$0xf]
    %v189 = vld [vmem:[#allocation7 + $0x4] sm:$0xf]
    %v190 = vld [vmem:[#allocation7 + $0x8] sm:$0xf]
    %v191 = vld [vmem:[#allocation7 + $0xc] sm:$0xf]
    %v192 = vld [vmem:[%s4] sm:$0x1]
    %v193 = vmul.f32 %v174, 0.851
    %v194 = vmul.f32 %v177, 0.851
    %v195 = vmul.f32 %v182, 0.851
    %v196 = vmul.f32 %v185, 0.851
    %v197 = vtanh.pop %v193
    %v198 = vtanh.pop %v194
    %v199 = vtanh.pop %v195
    %v200 = vtanh.pop %v196
    %v201 = vmul.f32 %v197, 0.5
    %v202 = vmul.f32 %v198, 0.5
    %v203 = vmul.f32 %v199, 0.5
    %v204 = vmul.f32 %v200, 0.5
    %v205 = vadd.f32 %v201, 0.5
    %v206 = vadd.f32 %v202, 0.5
    %v207 = vadd.f32 %v203, 0.5
    %v208 = vadd.f32 %v204, 0.5
    %v209 = vmul.f32 %v174, %v205
    %v210 = vmul.f32 %v177, %v206
    %v211 = vmul.f32 %v182, %v207
    %v212 = vmul.f32 %v185, %v208
    %v213 = vpack.c.bf16 %v210, %v209
    %v214 = vpack.c.bf16 %v212, %v211
    %v216 = vlaneseq
    %v217 = vshrl.u32 %v216, 7
    %v218 = vsub.s32 0, %v217
    %v219 = vrot.slane %v192, %v218
    %v225 = vunpack.c.l.b16 %v188
    %v226 = vunpack.c.l.b16 %v189
    %v227 = vunpack.c.l.b16 %v190
    %v228 = vunpack.c.l.b16 %v191
    %v229 = vpack.c.b16 %v226, %v225
    %v230 = vpack.c.b16 %v228, %v227
    %v234 = vsel %vm132, %v213, 0
    %v237 = vsel %vm132, %v214, 0
    %239 = vmatprep.subr.bf16.mxu0 0
    %240 = vmatpush1.bf16.msra.mxu0 %v229
    %241 = vmatprep.subr.bf16.mxu0 0
    %242 = vmatpush1.bf16.msra.mxu0 %v230
    %243 = vmatprep.subr.bf16.mxu0 0
    %244 = vmatpush1.bf16.msra.mxu0 0
    %245 = vmatprep.subr.bf16.mxu0 0
    %246 = vmatpush1.bf16.msra.mxu0 0
    %247 = vmatprep.subr.bf16.mxu0 0
    %248 = vmatpush1.bf16.msra.mxu0 0
    %249 = vmatprep.subr.bf16.mxu0 0
    %250 = vmatpush1.bf16.msra.mxu0 0
    %251 = vmatprep.subr.bf16.mxu0 0
    %252 = vmatpush1.bf16.msra.mxu0 0
    %253 = vmatprep.subr.bf16.mxu0 0
    %254 = vmatpush1.bf16.msra.mxu0 0
    %255 = vmatprep.subr.bf16.mxu0 0
    %256 = vmatpush1.bf16.msra.mxu0 0
    %257 = vmatprep.subr.bf16.mxu0 0
    %258 = vmatpush1.bf16.msra.mxu0 0
    %259 = vmatprep.subr.bf16.mxu0 0
    %260 = vmatpush1.bf16.msra.mxu0 0
    %261 = vmatprep.subr.bf16.mxu0 0
    %262 = vmatpush1.bf16.msra.mxu0 0
    %263 = vmatprep.subr.bf16.mxu0 0
    %264 = vmatpush1.bf16.msra.mxu0 0
    %265 = vmatprep.subr.bf16.mxu0 0
    %266 = vmatpush1.bf16.msra.mxu0 0
    %267 = vmatprep.subr.bf16.mxu0 0
    %268 = vmatpush1.bf16.msra.mxu0 0
    %269 = vmatprep.subr.bf16.mxu0 0
    %270 = vmatpush1.bf16.msra.mxu0 0
    %271 = vmatprep.mubr.bf16.mxu0 0
    %272 = vmatmul.mubr.bf16.gmra.mrb[0].mxu0 %v234
    %v273 = vpop.f32.mrb[0].mxu0
    %v274 = vadd.f32 %v219, %v273
    %v275 = vpop.f32.mrb[0].mxu0
    %v276 = vpop.f32.mrb[0].mxu0
    %v277 = vadd.f32 %v219, %v276
    %v278 = vpop.f32.mrb[0].mxu0
    %279 = vmatprep.mubr.bf16.mxu0 0
    %280 = vmatmul.mubr.bf16.gmra.mrb[0].mxu0 %v237
    %v281 = vpop.f32.mrb[0].mxu0
    %v282 = vadd.f32 %v219, %v281
    %v283 = vpop.f32.mrb[0].mxu0
    %v284 = vpop.f32.mrb[0].mxu0
    %v285 = vadd.f32 %v219, %v284
    %v286 = vpop.f32.mrb[0].mxu0
    %287 = vdwg.mxu0
    %v288 = vld [vmem:[#allocation8] sm:$0xf]
    %v289 = vld [vmem:[#allocation8 + $0x4] sm:$0xf]
    %v290 = vld [vmem:[#allocation8 + $0x8] sm:$0xf]
    %v291 = vld [vmem:[#allocation8 + $0xc] sm:$0xf]
    %v292 = vld [vmem:[#allocation8 + $0x10] sm:$0xf]
    %v293 = vld [vmem:[#allocation8 + $0x14] sm:$0x7]
    %v294 = vld [vmem:[%s6] sm:$0x1]
    %v295 = vmul.f32 %v274, 0.851
    %v296 = vmul.f32 %v277, 0.851
    %v297 = vmul.f32 %v282, 0.851
    %v298 = vmul.f32 %v285, 0.851
    %v299 = vtanh.pop %v295
    %v300 = vtanh.pop %v296
    %v301 = vtanh.pop %v297
    %v302 = vtanh.pop %v298
    %v303 = vmul.f32 %v299, 0.5
    %v304 = vmul.f32 %v300, 0.5
    %v305 = vmul.f32 %v301, 0.5
    %v306 = vmul.f32 %v302, 0.5
    %v307 = vadd.f32 %v303, 0.5
    %v308 = vadd.f32 %v304, 0.5
    %v309 = vadd.f32 %v305, 0.5
    %v310 = vadd.f32 %v306, 0.5
    %v311 = vmul.f32 %v274, %v307
    %v312 = vmul.f32 %v277, %v308
    %v313 = vmul.f32 %v282, %v309
    %v314 = vmul.f32 %v285, %v310
    %v315 = vpack.c.bf16 %v312, %v311
    %v316 = vpack.c.bf16 %v314, %v313
    %v318 = vlaneseq
    %v319 = vshrl.u32 %v318, 7
    %v320 = vsub.s32 0, %v319
    %v321 = vrot.slane %v294, %v320
    %v329 = vunpack.c.l.b16 %v288
    %v330 = vunpack.c.l.b16 %v289
    %v331 = vunpack.c.l.b16 %v290
    %v332 = vunpack.c.l.b16 %v291
    %v333 = vunpack.c.l.b16 %v292
    %v334 = vunpack.c.l.b16 %v293
    %v335 = vpack.c.b16 %v330, %v329
    %v336 = vpack.c.b16 %v332, %v331
    %v337 = vpack.c.b16 %v334, %v333
    %vm340 = vcmask 367616
    %v342 = vsel %vm340, %v315, 0
    %v345 = vsel %vm340, %v316, 0
    %vm347 = vcmask 1045504
    %vm348 = vcmask 1046528
    %v349 = vsel %vm347, 4294967295, 65535
    %v350 = vsel %vm348, %v349, 0
    %v352 = vand.u32 %v337, %v350
    %354 = vmatprep.subr.bf16.mxu0 0
    %355 = vmatpush1.bf16.msra.mxu0 %v335
    %356 = vmatprep.subr.bf16.mxu0 0
    %357 = vmatpush1.bf16.msra.mxu0 %v336
    %358 = vmatprep.subr.bf16.mxu0 0
    %359 = vmatpush1.bf16.msra.mxu0 %v352
    %360 = vmatprep.subr.bf16.mxu0 0
    %361 = vmatpush1.bf16.msra.mxu0 0
    %362 = vmatprep.subr.bf16.mxu0 0
    %363 = vmatpush1.bf16.msra.mxu0 0
    %364 = vmatprep.subr.bf16.mxu0 0
    %365 = vmatpush1.bf16.msra.mxu0 0
    %366 = vmatprep.subr.bf16.mxu0 0
    %367 = vmatpush1.bf16.msra.mxu0 0
    %368 = vmatprep.subr.bf16.mxu0 0
    %369 = vmatpush1.bf16.msra.mxu0 0
    %370 = vmatprep.subr.bf16.mxu0 0
    %371 = vmatpush1.bf16.msra.mxu0 0
    %372 = vmatprep.subr.bf16.mxu0 0
    %373 = vmatpush1.bf16.msra.mxu0 0
    %374 = vmatprep.subr.bf16.mxu0 0
    %375 = vmatpush1.bf16.msra.mxu0 0
    %376 = vmatprep.subr.bf16.mxu0 0
    %377 = vmatpush1.bf16.msra.mxu0 0
    %378 = vmatprep.subr.bf16.mxu0 0
    %379 = vmatpush1.bf16.msra.mxu0 0
    %380 = vmatprep.subr.bf16.mxu0 0
    %381 = vmatpush1.bf16.msra.mxu0 0
    %382 = vmatprep.subr.bf16.mxu0 0
    %383 = vmatpush1.bf16.msra.mxu0 0
    %384 = vmatprep.subr.bf16.mxu0 0
    %385 = vmatpush1.bf16.msra.mxu0 0
    %386 = vmatprep.mubr.bf16.mxu0 0
    %387 = vmatmul.mubr.bf16.gmra.mrb[0].mxu0 %v342
    %v388 = vpop.f32.mrb[0].mxu0
    %v389 = vadd.f32 %v321, %v388
    %v390 = vpop.f32.mrb[0].mxu0
    %v391 = vpop.f32.mrb[0].mxu0
    %v392 = vadd.f32 %v321, %v391
    %v393 = vpop.f32.mrb[0].mxu0
    %394 = vmatprep.mubr.bf16.mxu0 0
    %395 = vmatmul.mubr.bf16.gmra.mrb[0].mxu0 %v345
    %v396 = vpop.f32.mrb[0].mxu0
    %v397 = vadd.f32 %v321, %v396
    %v398 = vpop.f32.mrb[0].mxu0
    %v399 = vpop.f32.mrb[0].mxu0
    %v400 = vadd.f32 %v321, %v399
    %v401 = vpop.f32.mrb[0].mxu0
    %402 = vdwg.mxu0
    %vm403 = vcmask 523264
    %404 = vst.msk [vmem:[#allocation10] sm:$0xff] %vm403, %v389
    %405 = vst.msk [vmem:[#allocation10 + $0x8] sm:$0xff] %vm403, %v392
    %406 = vst.msk [vmem:[#allocation10 + $0x10] sm:$0xff] %vm403, %v397
    %407 = vst.msk [vmem:[#allocation10 + $0x18] sm:$0xff] %vm403, %v400
    // Predicated region
    $region46: #{tpu_custom_call.1} parent=1 // pred_check
      _
    $region47: #{tpu_custom_call.1} parent=1 // pred_check_branch
      %409 = sbr.rel (0) target = $region49
    $region48: #{tpu_custom_call.1} parent=1 // pred_region
      %s411 = ssub.s32 512, 512
      %412 = vsyncadd [#allocation4], %s411
      %s413 = sshll.u32 [#allocation10], 4
      %s414 = int_to_ptr.vmem [resolvable:$true] %s413
      %419 = dma.vmem_to_hbm [thread:$0]  %s414, 512, %s7, [#allocation4], 128, 128, 8
    $region49: #{tpu_custom_call.1} parent=1 // pred_fallthru
      _
    // Predicated region
    $region50: #{tpu_custom_call.1} parent=1 // pred_check
      _
    $region51: #{tpu_custom_call.1} parent=1 // pred_check_branch
      %421 = sbr.rel (0) target = $region53
    $region52: #{tpu_custom_call.1} parent=1 // pred_region
      %422 = dma.done [#allocation4], 512
    $region53: #{tpu_custom_call.1} parent=1 // pred_fallthru
      _
    %423 = vsyncpa [#allocation3], 1
    %424 = vsyncpa [#allocation6], 1
    %425 = vsyncpa [#allocation9], 1
    %426 = vsyncpa [#allocation4], 1

</llo_original>
